<compile_context>
chip_gen: v7x
topology: tpu7x:2x2x1
jax: 0.10.0
libtpu: 0.0.40
codegen_flags: <defaults>
</compile_context>

<pallas_src>
import math

import jax
import jax.numpy as jnp
from jax.experimental import pallas as pl
from jax.experimental.pallas import tpu as pltpu


# ------------------------------ fused kernel ------------------------------
def _make_mixer_kernel(n_weights, L, negative_slope=0.01):
    """Fused kernel body: all Mixer layers for one batch element."""

    def kernel(*refs):
        x_ref = refs[0]
        w_refs = refs[1:1 + n_weights]
        o_ref = refs[1 + n_weights]

        x = x_ref[...]                                    # (C0, L); batch dim squeezed
        # Hoisted once per block: boundary masks + bias row of X_cat.
        lane = jax.lax.broadcasted_iota(jnp.int32, (1, L), 1)
        is_first = lane == 0
        is_last = lane == L - 1
        ones_row = jnp.ones((1, L), jnp.float32)

        for idx, w_ref in enumerate(w_refs):
            # x shifted right by one lane (x[:, l-1]); zero at l == 0.
            x_m1 = jnp.where(is_first, 0.0, pltpu.roll(x, shift=1, axis=1))
            # x shifted left by one lane (x[:, l+1]); zero at l == L-1.
            # pltpu.roll requires a non-negative shift: left-by-1 == right-by-(L-1).
            x_p1 = jnp.where(is_last, 0.0, pltpu.roll(x, shift=L - 1, axis=1))

            # Single lane-dense RHS: all 3 taps + a ones row folding the bias.
            x_cat = jnp.concatenate([x_m1, x, x_p1, ones_row], axis=0)

            # One MXU matmul per layer (instead of 3 tap matmuls + bias add).
            y = jnp.dot(w_ref[...], x_cat, preferred_element_type=jnp.float32)

            if idx < n_weights - 1:   # ConvBlocks: LeakyReLU; top conv: identity.
                y = jnp.where(y >= 0, y, negative_slope * y)
            x = y
            # Dropout(dropout) in inference mode is the identity.

        o_ref[...] = x.astype(o_ref.dtype)

    return kernel


def mixer_forward(x, packed_weights):
    """Fused Mixer forward.

    x:               (B, C0, L) float32
    packed_weights:  list of (C_out, 3*C_in + 1) arrays, one per conv layer
                     (all ConvBlocks followed by the top conv), packed once.
    """
    B, C0, L = x.shape
    n_w = len(packed_weights)
    C_last = packed_weights[-1].shape[0]

    kernel = _make_mixer_kernel(n_w, L)

    flops = 2 * B * sum(w.shape[0] * w.shape[1] * L for w in packed_weights)
    bytes_accessed = 4 * (x.size + B * C_last * L
                          + sum(int(w.size) for w in packed_weights))
    cost = pl.CostEstimate(flops=flops, transcendentals=0,
                           bytes_accessed=bytes_accessed)

    in_specs = [pl.BlockSpec((pl.Squeezed(), C0, L), lambda i: (i, 0, 0))]
    for w in packed_weights:
        # Full-array weight block with a constant index map: fetched once and
        # kept resident in VMEM across the (parallel) batch grid.
        in_specs.append(pl.BlockSpec(w.shape, lambda i: (0, 0)))

    return pl.pallas_call(
        kernel,
        out_shape=jax.ShapeDtypeStruct((B, C_last, L), jnp.float32),
        grid=(B,),
        in_specs=in_specs,
        out_specs=pl.BlockSpec((pl.Squeezed(), C_last, L), lambda i: (i, 0, 0)),
        compiler_params=pltpu.CompilerParams(
            dimension_semantics=("parallel",),   # batch axis -> both TCs on v7x
        ),
        cost_estimate=cost,
    )(x, *packed_weights)


# ------------------------------ params ------------------------------
def init_conv1d_params(key, in_c, out_c, k=3):
    """Deterministic init matching torch.nn.Conv1d default shapes/ranges."""
    wkey, bkey = jax.random.split(key)
    bound = 1.0 / math.sqrt(in_c * k)
    w = jax.random.uniform(wkey, (out_c, in_c, k), jnp.float32, -bound, bound)
    b = jax.random.uniform(bkey, (out_c,), jnp.float32, -bound, bound)
    return w, b


def init_mixer_params(key, channels):
    params = []
    for layer_idx, (in_c, out_c) in enumerate(zip(channels[:-1], channels[1:])):
        params.append(init_conv1d_params(jax.random.fold_in(key, layer_idx),
                                         in_c, out_c))
    # top Conv1d(channels[-1], channels[-1], 3, 1, 1)
    params.append(init_conv1d_params(jax.random.fold_in(key, 1000),
                                     channels[-1], channels[-1]))
    return params


def pack_conv_weight(w, b):
    """(C_out, C_in, 3), (C_out,) -> (C_out, 3*C_in + 1) matching X_cat rows."""
    c_out = w.shape[0]
    return jnp.concatenate(
        [w[:, :, 0], w[:, :, 1], w[:, :, 2], b.reshape(c_out, 1)], axis=1
    ).astype(jnp.float32)


def pack_mixer_params(params):
    """Done once at init (not per forward): single weight operand per layer."""
    return [pack_conv_weight(w, b) for (w, b) in params]


# ----------------------- pure-JAX reference (for checking) -----------------------
def conv1d_k3_ref(x, w, b, *, apply_leaky_relu):
    y = jax.lax.conv_general_dilated(
        x, w, window_strides=(1,), padding=((1, 1),),
        dimension_numbers=("NCH", "OIH", "NCH"))
    y = y + b.reshape(1, -1, 1)
    if apply_leaky_relu:
        y = jnp.where(y >= 0, y, 0.01 * y)
    return y


def mixer_forward_ref(x, params):
    for (w, b) in params[:-1]:
        x = conv1d_k3_ref(x, w, b, apply_leaky_relu=True)
    w, b = params[-1]
    return conv1d_k3_ref(x, w, b, apply_leaky_relu=False)


if __name__ == "__main__":
    key = jax.random.PRNGKey(0)

    # Small shapes consistent with Mixer: channels list + 1-D sequence input.
    channels = [4, 8, 16]   # ConvBlock(4->8), ConvBlock(8->16), top Conv1d(16->16)
    B, L = 2, 128
    dropout = 0.25          # inference mode: Dropout == identity

    xkey, pkey = jax.random.split(key)
    x = jax.random.normal(xkey, (B, channels[0], L), jnp.float32)
    params = init_mixer_params(pkey, channels)
    packed = pack_mixer_params(params)   # packed once, reused every forward

    fwd = jax.jit(mixer_forward)
    out = jax.block_until_ready(fwd(x, packed))

    ref = jax.block_until_ready(mixer_forward_ref(x, params))
    assert out.shape == (B, channels[-1], L), out.shape
    max_err = float(jnp.max(jnp.abs(out - ref)))
    assert jnp.allclose(out, ref, atol=2e-2, rtol=2e-2), f"mismatch vs ref: {max_err}"

    print("KERNEL_OK")
</pallas_src>

<mosaic_0001>
module attributes {stable_mosaic.version = 11 : i64} {
  func.func @kernel(%arg0: i32, %arg1: memref<1x4x128xf32, #tpu.memory_space<vmem>>, %arg2: memref<8x13xf32, #tpu.memory_space<vmem>>, %arg3: memref<16x25xf32, #tpu.memory_space<vmem>>, %arg4: memref<16x49xf32, #tpu.memory_space<vmem>>, %arg5: memref<1x16x128xf32, #tpu.memory_space<vmem>>) attributes {dimension_semantics = [#tpu.dimension_semantics<parallel>], iteration_bounds = array<i64: 2>, scalar_prefetch = 0 : i64, scratch_operands = 0 : i64, tpu.core_type = #tpu.core_type<tc>, window_params = [{transform_indices = @transform_0, window_bounds = array<i64: 1, 4, 128>}, {pipeline_mode = #tpu.pipeline_mode<synchronous>, transform_indices = @transform_1, window_bounds = array<i64: 8, 13>}, {pipeline_mode = #tpu.pipeline_mode<synchronous>, transform_indices = @transform_2, window_bounds = array<i64: 16, 25>}, {pipeline_mode = #tpu.pipeline_mode<synchronous>, transform_indices = @transform_3, window_bounds = array<i64: 16, 49>}, {transform_indices = @transform_4, window_bounds = array<i64: 1, 16, 128>}]} {
    %c0 = arith.constant 0 : index
    %c0_0 = arith.constant 0 : index
    %c0_1 = arith.constant 0 : index
    %0 = vector.load %arg1[%c0, %c0_0, %c0_1] : memref<1x4x128xf32, #tpu.memory_space<vmem>>, vector<1x4x128xf32>
    %1 = vector.shape_cast %0 : vector<1x4x128xf32> to vector<4x128xf32>
    %2 = tpu.iota {dimensions = array<i32: 1>} : vector<1x128xi32>
    %c0_i32 = arith.constant 0 : i32
    %3 = vector.broadcast %c0_i32 : i32 to vector<1x128xi32>
    %4 = arith.cmpi eq, %2, %3 : vector<1x128xi32>
    %c127_i32 = arith.constant 127 : i32
    %5 = vector.broadcast %c127_i32 : i32 to vector<1x128xi32>
    %6 = arith.cmpi eq, %2, %5 : vector<1x128xi32>
    %cst = arith.constant 1.000000e+00 : f32
    %7 = vector.broadcast %cst : f32 to vector<1x128xf32>
    %c1_i32 = arith.constant 1 : i32
    %8 = tpu.dynamic_rotate %1 by %c1_i32 dim 1 : vector<4x128xf32>, i32 -> vector<4x128xf32>
    %cst_2 = arith.constant 0.000000e+00 : f32
    %9 = vector.shape_cast %4 : vector<1x128xi1> to vector<1x128xi1>
    %10 = vector.broadcast %9 : vector<1x128xi1> to vector<4x128xi1>
    %11 = vector.broadcast %cst_2 : f32 to vector<4x128xf32>
    %12 = arith.select %10, %11, %8 : vector<4x128xi1>, vector<4x128xf32>
    %c127_i32_3 = arith.constant 127 : i32
    %13 = tpu.dynamic_rotate %1 by %c127_i32_3 dim 1 : vector<4x128xf32>, i32 -> vector<4x128xf32>
    %cst_4 = arith.constant 0.000000e+00 : f32
    %14 = vector.shape_cast %6 : vector<1x128xi1> to vector<1x128xi1>
    %15 = vector.broadcast %14 : vector<1x128xi1> to vector<4x128xi1>
    %16 = vector.broadcast %cst_4 : f32 to vector<4x128xf32>
    %17 = arith.select %15, %16, %13 : vector<4x128xi1>, vector<4x128xf32>
    %18 = tpu.concatenate %12, %1, %17, %7 in 0 : vector<4x128xf32>, vector<4x128xf32>, vector<4x128xf32>, vector<1x128xf32> -> vector<13x128xf32>
    %c0_5 = arith.constant 0 : index
    %c0_6 = arith.constant 0 : index
    %19 = vector.load %arg2[%c0_5, %c0_6] : memref<8x13xf32, #tpu.memory_space<vmem>>, vector<8x13xf32>
    %cst_7 = arith.constant dense<0.000000e+00> : vector<8x128xf32>
    %20 = tpu.matmul %19, %18, %cst_7 {dimension_numbers = #tpu.dot_dimension_numbers<[1], [0], [0], [1], [0, 0, 1, 1], [], []>} : vector<8x13xf32>, vector<13x128xf32>, vector<8x128xf32> -> vector<8x128xf32>
    %cst_8 = arith.constant 0.000000e+00 : f32
    %21 = vector.broadcast %cst_8 : f32 to vector<8x128xf32>
    %22 = arith.cmpf oge, %20, %21 : vector<8x128xf32>
    %cst_9 = arith.constant 0.00999999977 : f32
    %23 = vector.broadcast %cst_9 : f32 to vector<8x128xf32>
    %24 = arith.mulf %23, %20 : vector<8x128xf32>
    %25 = arith.select %22, %20, %24 : vector<8x128xi1>, vector<8x128xf32>
    %c1_i32_10 = arith.constant 1 : i32
    %26 = tpu.dynamic_rotate %25 by %c1_i32_10 dim 1 : vector<8x128xf32>, i32 -> vector<8x128xf32>
    %cst_11 = arith.constant 0.000000e+00 : f32
    %27 = vector.shape_cast %4 : vector<1x128xi1> to vector<1x128xi1>
    %28 = vector.broadcast %27 : vector<1x128xi1> to vector<8x128xi1>
    %29 = vector.broadcast %cst_11 : f32 to vector<8x128xf32>
    %30 = arith.select %28, %29, %26 : vector<8x128xi1>, vector<8x128xf32>
    %c127_i32_12 = arith.constant 127 : i32
    %31 = tpu.dynamic_rotate %25 by %c127_i32_12 dim 1 : vector<8x128xf32>, i32 -> vector<8x128xf32>
    %cst_13 = arith.constant 0.000000e+00 : f32
    %32 = vector.shape_cast %6 : vector<1x128xi1> to vector<1x128xi1>
    %33 = vector.broadcast %32 : vector<1x128xi1> to vector<8x128xi1>
    %34 = vector.broadcast %cst_13 : f32 to vector<8x128xf32>
    %35 = arith.select %33, %34, %31 : vector<8x128xi1>, vector<8x128xf32>
    %36 = tpu.concatenate %30, %25, %35, %7 in 0 : vector<8x128xf32>, vector<8x128xf32>, vector<8x128xf32>, vector<1x128xf32> -> vector<25x128xf32>
    %c0_14 = arith.constant 0 : index
    %c0_15 = arith.constant 0 : index
    %37 = vector.load %arg3[%c0_14, %c0_15] : memref<16x25xf32, #tpu.memory_space<vmem>>, vector<16x25xf32>
    %cst_16 = arith.constant dense<0.000000e+00> : vector<16x128xf32>
    %38 = tpu.matmul %37, %36, %cst_16 {dimension_numbers = #tpu.dot_dimension_numbers<[1], [0], [0], [1], [0, 0, 1, 1], [], []>} : vector<16x25xf32>, vector<25x128xf32>, vector<16x128xf32> -> vector<16x128xf32>
    %cst_17 = arith.constant 0.000000e+00 : f32
    %39 = vector.broadcast %cst_17 : f32 to vector<16x128xf32>
    %40 = arith.cmpf oge, %38, %39 : vector<16x128xf32>
    %cst_18 = arith.constant 0.00999999977 : f32
    %41 = vector.broadcast %cst_18 : f32 to vector<16x128xf32>
    %42 = arith.mulf %41, %38 : vector<16x128xf32>
    %43 = arith.select %40, %38, %42 : vector<16x128xi1>, vector<16x128xf32>
    %c1_i32_19 = arith.constant 1 : i32
    %44 = tpu.dynamic_rotate %43 by %c1_i32_19 dim 1 : vector<16x128xf32>, i32 -> vector<16x128xf32>
    %cst_20 = arith.constant 0.000000e+00 : f32
    %45 = vector.shape_cast %4 : vector<1x128xi1> to vector<1x128xi1>
    %46 = vector.broadcast %45 : vector<1x128xi1> to vector<16x128xi1>
    %47 = vector.broadcast %cst_20 : f32 to vector<16x128xf32>
    %48 = arith.select %46, %47, %44 : vector<16x128xi1>, vector<16x128xf32>
    %c127_i32_21 = arith.constant 127 : i32
    %49 = tpu.dynamic_rotate %43 by %c127_i32_21 dim 1 : vector<16x128xf32>, i32 -> vector<16x128xf32>
    %cst_22 = arith.constant 0.000000e+00 : f32
    %50 = vector.shape_cast %6 : vector<1x128xi1> to vector<1x128xi1>
    %51 = vector.broadcast %50 : vector<1x128xi1> to vector<16x128xi1>
    %52 = vector.broadcast %cst_22 : f32 to vector<16x128xf32>
    %53 = arith.select %51, %52, %49 : vector<16x128xi1>, vector<16x128xf32>
    %54 = tpu.concatenate %48, %43, %53, %7 in 0 : vector<16x128xf32>, vector<16x128xf32>, vector<16x128xf32>, vector<1x128xf32> -> vector<49x128xf32>
    %c0_23 = arith.constant 0 : index
    %c0_24 = arith.constant 0 : index
    %55 = vector.load %arg4[%c0_23, %c0_24] : memref<16x49xf32, #tpu.memory_space<vmem>>, vector<16x49xf32>
    %cst_25 = arith.constant dense<0.000000e+00> : vector<16x128xf32>
    %56 = tpu.matmul %55, %54, %cst_25 {dimension_numbers = #tpu.dot_dimension_numbers<[1], [0], [0], [1], [0, 0, 1, 1], [], []>} : vector<16x49xf32>, vector<49x128xf32>, vector<16x128xf32> -> vector<16x128xf32>
    %c0_26 = arith.constant 0 : index
    %c0_27 = arith.constant 0 : index
    %c0_28 = arith.constant 0 : index
    %57 = vector.load %arg5[%c0_26, %c0_27, %c0_28] : memref<1x16x128xf32, #tpu.memory_space<vmem>>, vector<1x16x128xf32>
    %58 = vector.shape_cast %57 : vector<1x16x128xf32> to vector<16x128xf32>
    %59 = vector.shape_cast %56 : vector<16x128xf32> to vector<1x16x128xf32>
    tpu.vector_store %arg5[%c0_26, %c0_27, %c0_28], %59 {strides = array<i32>} : memref<1x16x128xf32, #tpu.memory_space<vmem>>, vector<1x16x128xf32>,
    return
  }
  func.func @transform_0(%arg0: i32) -> (i32, i32, i32) {
    %c0_i32 = arith.constant 0 : i32
    %c0_i32_0 = arith.constant 0 : i32
    %c0_i32_1 = arith.constant 0 : i32
    return %arg0, %c0_i32, %c0_i32_0 : i32, i32, i32
  }
  func.func @transform_1(%arg0: i32) -> (i32, i32) {
    %c0_i32 = arith.constant 0 : i32
    %c0_i32_0 = arith.constant 0 : i32
    %c0_i32_1 = arith.constant 0 : i32
    return %c0_i32, %c0_i32_0 : i32, i32
  }
  func.func @transform_2(%arg0: i32) -> (i32, i32) {
    %c0_i32 = arith.constant 0 : i32
    %c0_i32_0 = arith.constant 0 : i32
    %c0_i32_1 = arith.constant 0 : i32
    return %c0_i32, %c0_i32_0 : i32, i32
  }
  func.func @transform_3(%arg0: i32) -> (i32, i32) {
    %c0_i32 = arith.constant 0 : i32
    %c0_i32_0 = arith.constant 0 : i32
    %c0_i32_1 = arith.constant 0 : i32
    return %c0_i32, %c0_i32_0 : i32, i32
  }
  func.func @transform_4(%arg0: i32) -> (i32, i32, i32) {
    %c0_i32 = arith.constant 0 : i32
    %c0_i32_0 = arith.constant 0 : i32
    %c0_i32_1 = arith.constant 0 : i32
    return %arg0, %c0_i32, %c0_i32_0 : i32, i32, i32
  }
}

</mosaic_0001>

<llo_original>
// kernel: mixer_forward.1
$region0: #{mixer_forward.1}
  #allocation0 [shape = 'u32[]', space=smem, size = 0x4, offset = 0x4, fixed_abs, tag = 'smem constant byte address 0x4 - core index']
  #allocation1 [shape = 'u32[144,128]{1,0:T(1,128)}', space=vmem, size = 0x12000, scoped, tag = 'internal scratch']
  %s0 = inlined_call_operand.hbm [shape: f32[2,4,128], index: 0, kind: input, shape index: {}]
  %s1 = inlined_call_operand.hbm [shape: f32[8,13], index: 1, kind: input, shape index: {}]
  %s2 = inlined_call_operand.hbm [shape: f32[16,25], index: 2, kind: input, shape index: {}]
  %s3 = inlined_call_operand.hbm [shape: f32[16,49], index: 3, kind: input, shape index: {}]
  %s4 = inlined_call_operand.hbm [shape: f32[2,16,128], index: 4, kind: output, shape index: {}]
  %s5 = sld [smem:[#allocation0]]
  $region65: #{mixer_forward.1} parent=0
    _
  %s7 = ssub.s32 1, %s5
  %s8 = scalar_select 0, %s7, %s5
  $region1: #{mixer_forward.1} parent=0
    #allocation2 [shape = 'u8[4096]{0}', space=vmem, size = 0x1000, scoped, tag = 'input window, operand 0']
    #allocation3 [shape = 's32[2]{0}', space=sflag, size = 0x8, scoped, tag = 'scoped memory for mixer_forward.1']
    #allocation4 [shape = 's32[2]{0}', space=sflag, size = 0x8, scoped, tag = 'scoped memory for mixer_forward.1']
    #allocation5 [shape = 'u8[4096]{0}', space=vmem, size = 0x1000, scoped, tag = 'input window, operand 1, single buffered']
    #allocation6 [shape = 's32[1]{0}', space=sflag, size = 0x4, scoped, tag = 'scoped memory for mixer_forward.1']
    #allocation7 [shape = 'u8[8192]{0}', space=vmem, size = 0x2000, scoped, tag = 'input window, operand 2, single buffered']
    #allocation8 [shape = 'u8[8192]{0}', space=vmem, size = 0x2000, scoped, tag = 'input window, operand 3, single buffered']
    #allocation9 [shape = 's32[1]{0}', space=sflag, size = 0x4, scoped, tag = 'scoped memory for mixer_forward.1']
    #allocation10 [shape = 'u8[16384]{0}', space=vmem, size = 0x4000, scoped, tag = 'output window, operand 0']
    %9 = vsyncpa [#allocation3], 0
    %s10 = scalar_lea.sflag [#allocation3], 1
    %11 = vsyncpa %s10, 0
    %12 = vsyncpa [#allocation6], 0
    %13 = vsyncpa [#allocation9], 0
    %14 = vsyncpa [#allocation4], 0
    %s15 = scalar_lea.sflag [#allocation4], 1
    %16 = vsyncpa %s15, 0
    loop: start=0, step=1, limit=4
    $region2: #{mixer_forward.1} parent=1 // loop_pre_header
      _
    $region3: #{mixer_forward.1} parent=1 // loop_header
      %s18 = sphi 0, %s22
      %p19 = scmp.ge.s32.totalorder %s18, 4
      %s28 = sphi 0, %s30
      %s31 = sphi 0, %s28
      %s32 = sphi 0, %s31
      %s48 = sphi 0, %s32
      %s52 = sphi 0, %s52
      %s54 = sphi 0, %s52
      %s55 = sphi 0, %s54
      %s69 = sphi 0, %s55
      %s73 = sphi 0, %s73
      %s75 = sphi 0, %s73
      %s76 = sphi 0, %s75
      %s90 = sphi 0, %s76
      %s94 = sphi 0, %s94
      %s96 = sphi 0, %s94
      %s97 = sphi 0, %s96
      %s111 = sphi 0, %s97
      %s117 = sphi 0, %s119
      %s120 = sphi 0, %s117
      %s121 = sphi 0, %s120
      %s137 = sphi 0, %s121
    $region4: #{mixer_forward.1} parent=1 // loop_header_branch
      %21 = sbr.rel (%p19) target = $region8
    $region5: #{mixer_forward.1} parent=1 // loop_body
      %s23 = ssub.s32 %s18, 1
      %s24 = ssub.s32 %s18, 2
      %s25 = sadd.s32 %s18, 1
      %s26 = ssub.s32 %s18, %s25
      %p27 = scmp.eq.s32.totalorder %s26, 0
      %s29 = sadd.s32 %s28, 1
      %s30 = scalar_select %p27, %s28, %s29
      %p33 = pneg %p27
      %p34 = scmp.eq.s32.totalorder %s18, 1
      %p35 = por %p33, %p34
      %p36 = scmp.ne.s32.totalorder %s28, %s31
      %p37 = scmp.eq.s32.totalorder %s18, 0
      %p38 = por %p36, %p37
      %p39 = scmp.ne.s32.totalorder %s28, %s31
      %p40 = scmp.eq.s32.totalorder %s23, 1
      %p41 = por %p39, %p40
      %p42 = scmp.ne.s32.totalorder %s31, %s32
      %p43 = scmp.eq.s32.totalorder %s23, 0
      %p44 = por %p42, %p43
      %p45 = scmp.ne.s32.totalorder %s31, %s32
      %p46 = scmp.eq.s32.totalorder %s24, 1
      %p47 = por %p45, %p46
      %p49 = scmp.ne.s32.totalorder %s32, %s48
      %p50 = scmp.eq.s32.totalorder %s24, 0
      %p51 = por %p49, %p50
      %s53 = sadd.s32 %s52, 1
      %p56 = scmp.eq.s32.totalorder %s18, 1
      %p57 = scmp.ne.s32.totalorder %s52, %s54
      %p58 = scmp.eq.s32.totalorder %s18, 0
      %p59 = por %p57, %p58
      %p60 = scmp.ne.s32.totalorder %s52, %s54
      %p61 = scmp.eq.s32.totalorder %s23, 1
      %p62 = por %p60, %p61
      %p63 = scmp.ne.s32.totalorder %s54, %s55
      %p64 = scmp.eq.s32.totalorder %s23, 0
      %p65 = por %p63, %p64
      %p66 = scmp.ne.s32.totalorder %s54, %s55
      %p67 = scmp.eq.s32.totalorder %s24, 1
      %p68 = por %p66, %p67
      %p70 = scmp.ne.s32.totalorder %s55, %s69
      %p71 = scmp.eq.s32.totalorder %s24, 0
      %p72 = por %p70, %p71
      %s74 = sadd.s32 %s73, 1
      %p77 = scmp.eq.s32.totalorder %s18, 1
      %p78 = scmp.ne.s32.totalorder %s73, %s75
      %p79 = scmp.eq.s32.totalorder %s18, 0
      %p80 = por %p78, %p79
      %p81 = scmp.ne.s32.totalorder %s73, %s75
      %p82 = scmp.eq.s32.totalorder %s23, 1
      %p83 = por %p81, %p82
      %p84 = scmp.ne.s32.totalorder %s75, %s76
      %p85 = scmp.eq.s32.totalorder %s23, 0
      %p86 = por %p84, %p85
      %p87 = scmp.ne.s32.totalorder %s75, %s76
      %p88 = scmp.eq.s32.totalorder %s24, 1
      %p89 = por %p87, %p88
      %p91 = scmp.ne.s32.totalorder %s76, %s90
      %p92 = scmp.eq.s32.totalorder %s24, 0
      %p93 = por %p91, %p92
      %s95 = sadd.s32 %s94, 1
      %p98 = scmp.eq.s32.totalorder %s18, 1
      %p99 = scmp.ne.s32.totalorder %s94, %s96
      %p100 = scmp.eq.s32.totalorder %s18, 0
      %p101 = por %p99, %p100
      %p102 = scmp.ne.s32.totalorder %s94, %s96
      %p103 = scmp.eq.s32.totalorder %s23, 1
      %p104 = por %p102, %p103
      %p105 = scmp.ne.s32.totalorder %s96, %s97
      %p106 = scmp.eq.s32.totalorder %s23, 0
      %p107 = por %p105, %p106
      %p108 = scmp.ne.s32.totalorder %s96, %s97
      %p109 = scmp.eq.s32.totalorder %s24, 1
      %p110 = por %p108, %p109
      %p112 = scmp.ne.s32.totalorder %s97, %s111
      %p113 = scmp.eq.s32.totalorder %s24, 0
      %p114 = por %p112, %p113
      %s115 = ssub.s32 %s18, %s25
      %p116 = scmp.eq.s32.totalorder %s115, 0
      %s118 = sadd.s32 %s117, 1
      %s119 = scalar_select %p116, %s117, %s118
      %p122 = pneg %p116
      %p123 = scmp.eq.s32.totalorder %s18, 1
      %p124 = por %p122, %p123
      %p125 = scmp.ne.s32.totalorder %s117, %s120
      %p126 = scmp.eq.s32.totalorder %s18, 0
      %p127 = por %p125, %p126
      %p128 = scmp.ne.s32.totalorder %s117, %s120
      %p129 = scmp.eq.s32.totalorder %s23, 1
      %p130 = por %p128, %p129
      %p131 = scmp.ne.s32.totalorder %s120, %s121
      %p132 = scmp.eq.s32.totalorder %s23, 0
      %p133 = por %p131, %p132
      %p134 = scmp.ne.s32.totalorder %s120, %s121
      %p135 = scmp.eq.s32.totalorder %s24, 1
      %p136 = por %p134, %p135
      %p138 = scmp.ne.s32.totalorder %s121, %s137
      %p139 = scmp.eq.s32.totalorder %s24, 0
      %p140 = por %p138, %p139
      %p141 = scmp.le.s32.totalorder 1, %s18
      %p142 = scmp.lt.s32.totalorder %s18, 3
      %p143 = pnand %p141, %p142
      %p144 = pneg %p143
      // Predicated region
      $region9: #{mixer_forward.1} parent=5 // pred_check
        _
      $region10: #{mixer_forward.1} parent=5 // pred_check_branch
        %146 = sbr.rel (%p143) target = $region12
      $region11: #{mixer_forward.1} parent=5 // pred_region
        %s147 = ssub.s32 %s18, 1
        // Predicated region
        $region13: #{mixer_forward.1} parent=11 // pred_check
          %p148 = pneg %p65
        $region14: #{mixer_forward.1} parent=11 // pred_check_branch
          %150 = sbr.rel (%p148) target = $region16
        $region15: #{mixer_forward.1} parent=11 // pred_region
          %s152 = ssub.s32 128, 128
          %153 = vsyncadd [#allocation6], %s152
          %s155 = sshll.u32 [#allocation5], 4
          %s156 = int_to_ptr.vmem [resolvable:$true] %s155
          %158 = dma.hbm_to_vmem [thread:$0]  %s1, 128, %s156, [#allocation6]
        $region16: #{mixer_forward.1} parent=11 // pred_fallthru
          _
        // Predicated region
        $region17: #{mixer_forward.1} parent=11 // pred_check
          %p159 = pneg %p86
        $region18: #{mixer_forward.1} parent=11 // pred_check_branch
          %161 = sbr.rel (%p159) target = $region20
        $region19: #{mixer_forward.1} parent=11 // pred_region
          %s163 = ssub.s32 256, 256
          %164 = vsyncadd [#allocation6], %s163
          %s165 = sshll.u32 [#allocation7], 4
          %s166 = int_to_ptr.vmem [resolvable:$true] %s165
          %171 = dma.hbm_to_vmem [thread:$0]  %s2, 256, %s166, [#allocation6], 128, 128, 8
        $region20: #{mixer_forward.1} parent=11 // pred_fallthru
          _
        // Predicated region
        $region21: #{mixer_forward.1} parent=11 // pred_check
          %p172 = pneg %p107
        $region22: #{mixer_forward.1} parent=11 // pred_check_branch
          %174 = sbr.rel (%p172) target = $region24
        $region23: #{mixer_forward.1} parent=11 // pred_region
          %s176 = ssub.s32 256, 256
          %177 = vsyncadd [#allocation9], %s176
          %s178 = sshll.u32 [#allocation8], 4
          %s179 = int_to_ptr.vmem [resolvable:$true] %s178
          %184 = dma.hbm_to_vmem [thread:$0]  %s3, 256, %s179, [#allocation9], 128, 128, 8
        $region24: #{mixer_forward.1} parent=11 // pred_fallthru
          _
      $region12: #{mixer_forward.1} parent=5 // pred_fallthru
        _
      %p185 = scmp.lt.s32.totalorder %s18, 2
      // Predicated region
      $region25: #{mixer_forward.1} parent=5 // pred_check
        %p186 = pneg %p185
      $region26: #{mixer_forward.1} parent=5 // pred_check_branch
        %188 = sbr.rel (%p186) target = $region28
      $region27: #{mixer_forward.1} parent=5 // pred_region
        // Predicated region
        $region29: #{mixer_forward.1} parent=27 // pred_check
          %p189 = pneg %p38
        $region30: #{mixer_forward.1} parent=27 // pred_check_branch
          %191 = sbr.rel (%p189) target = $region32
        $region31: #{mixer_forward.1} parent=27 // pred_region
          %s192 = sand.u32 %s28, 1
          %s193 = scalar_lea.sflag [#allocation3], %s192
          %s194 = sand.u32 %s28, 1
          %s195 = smul.addr %s194, 4
          %s196 = scalar_lea.vmem [#allocation2], %s195
          %s198 = ssub.s32 64, 64
          %199 = vsyncadd %s193, %s198
          %s200 = smul.addr %s18, 64
          %s201 = scalar_lea.hbm %s0, %s200
          %s203 = sshll.u32 %s196, 4
          %s204 = int_to_ptr.vmem [resolvable:$true] %s203
          %206 = dma.hbm_to_vmem [thread:$0]  %s201, 64, %s204, %s193
        $region32: #{mixer_forward.1} parent=27 // pred_fallthru
          _
      $region28: #{mixer_forward.1} parent=5 // pred_fallthru
        _
      %p207 = scmp.le.s32.totalorder 1, %s18
      %p208 = scmp.lt.s32.totalorder %s18, 3
      %p209 = pnand %p207, %p208
      %p210 = pneg %p209
      // Predicated region
      $region33: #{mixer_forward.1} parent=5 // pred_check
        _
      $region34: #{mixer_forward.1} parent=5 // pred_check_branch
        %212 = sbr.rel (%p209) target = $region36
      $region35: #{mixer_forward.1} parent=5 // pred_region
        %s213 = ssub.s32 %s18, 1
        %s214 = sand.u32 %s31, 1
        %s215 = scalar_lea.sflag [#allocation3], %s214
        %s216 = sand.u32 %s31, 1
        %s217 = smul.addr %s216, 4
        %s218 = scalar_lea.vmem [#allocation2], %s217
        // Predicated region
        $region37: #{mixer_forward.1} parent=35 // pred_check
          %p219 = pneg %p44
        $region38: #{mixer_forward.1} parent=35 // pred_check_branch
          %221 = sbr.rel (%p219) target = $region40
        $region39: #{mixer_forward.1} parent=35 // pred_region
          %222 = dma.done %s215, 64
        $region40: #{mixer_forward.1} parent=35 // pred_fallthru
          _
        // Predicated region
        $region41: #{mixer_forward.1} parent=35 // pred_check
          %p223 = pneg %p65
        $region42: #{mixer_forward.1} parent=35 // pred_check_branch
          %225 = sbr.rel (%p223) target = $region44
        $region43: #{mixer_forward.1} parent=35 // pred_region
          %226 = dma.done [#allocation6], 128
        $region44: #{mixer_forward.1} parent=35 // pred_fallthru
          _
        // Predicated region
        $region45: #{mixer_forward.1} parent=35 // pred_check
          %p227 = pneg %p86
        $region46: #{mixer_forward.1} parent=35 // pred_check_branch
          %229 = sbr.rel (%p227) target = $region48
        $region47: #{mixer_forward.1} parent=35 // pred_region
          %230 = dma.done [#allocation6], 256
        $region48: #{mixer_forward.1} parent=35 // pred_fallthru
          _
        // Predicated region
        $region49: #{mixer_forward.1} parent=35 // pred_check
          %p231 = pneg %p107
        $region50: #{mixer_forward.1} parent=35 // pred_check_branch
          %233 = sbr.rel (%p231) target = $region52
        $region51: #{mixer_forward.1} parent=35 // pred_region
          %234 = dma.done [#allocation9], 256
        $region52: #{mixer_forward.1} parent=35 // pred_fallthru
          _
        %s235 = sand.u32 %s31, 1
        %s236 = scalar_lea.sflag [#allocation3], %s235
        %s237 = sand.u32 %s31, 1
        %s238 = smul.addr %s237, 4
        %s239 = scalar_lea.vmem [#allocation2], %s238
        %p240 = pneg %p44
        %p241 = pneg %p41
        %p242 = pneg %p65
        %p243 = pneg %p62
        %p244 = pneg %p86
        %p245 = pneg %p83
        %p246 = pneg %p107
        %p247 = pneg %p104
        %p248 = pneg %p133
        %p249 = pneg %p130
        %s250 = sand.u32 %s120, 1
        %s251 = scalar_lea.sflag [#allocation4], %s250
        %s252 = sand.u32 %s120, 1
        %s253 = smul.addr %s252, 16
        %s254 = scalar_lea.vmem [#allocation10], %s253
        %v255 = vld [vmem:[%s218] sm:$0xf]
        %v256 = vlaneseq
        %v257 = vand.u32 %v256, 127
        %vm258 = vcmp.eq.s32.totalorder %v257, 0
        %vm259 = vcmp.eq.s32.totalorder %v257, 127
        %260 = vrot.lane.b32.xlu0 %v255, 1
        %v261 = vpop.permute.xlu0 %260
        %v262 = vsel %vm258, 1, 0
        %vm263 = vcmp.eq.s32.totalorder %v262, 1
        %v264 = vsel %vm263, 0.0, %v261
        %265 = vrot.lane.b32.xlu0 %v255, 127
        %v266 = vpop.permute.xlu0 %265
        %v267 = vsel %vm259, 1, 0
        %vm268 = vcmp.eq.s32.totalorder %v267, 1
        %v269 = vsel %vm268, 0.0, %v266
        %v271 = vrot.slane %v255, 4
        %vm273 = vcmask 1043456
        %v274 = vsel %vm273, %v264, %v271
        %v275 = vsel %vm273, %v269, 1.0
        %v276 = vld [vmem:[#allocation5] sm:$0xff]
        %vm277 = vcmask 105472
        %v279 = vsel %vm277, %v276, 0
        %vm281 = vcmask 1044480
        %v283 = vsel %vm281, %v275, 0
        %285 = vmatprep.subr.mxu0 0.0
        %286 = vmatpush1.msra.mxu0 %v274
        %287 = vmatprep.subr.mxu0 0.0
        %288 = vmatpush1.msra.mxu0 %v283
        %289 = vmatprep.subr.mxu0 0.0
        %290 = vmatpush1.msra.mxu0 0.0
        %291 = vmatprep.subr.mxu0 0.0
        %292 = vmatpush1.msra.mxu0 0.0
        %293 = vmatprep.subr.mxu0 0.0
        %294 = vmatpush1.msra.mxu0 0.0
        %295 = vmatprep.subr.mxu0 0.0
        %296 = vmatpush1.msra.mxu0 0.0
        %297 = vmatprep.subr.mxu0 0.0
        %298 = vmatpush1.msra.mxu0 0.0
        %299 = vmatprep.subr.mxu0 0.0
        %300 = vmatpush1.msra.mxu0 0.0
        %301 = vmatprep.subr.mxu0 0.0
        %302 = vmatpush1.msra.mxu0 0.0
        %303 = vmatprep.subr.mxu0 0.0
        %304 = vmatpush1.msra.mxu0 0.0
        %305 = vmatprep.subr.mxu0 0.0
        %306 = vmatpush1.msra.mxu0 0.0
        %307 = vmatprep.subr.mxu0 0.0
        %308 = vmatpush1.msra.mxu0 0.0
        %309 = vmatprep.subr.mxu0 0.0
        %310 = vmatpush1.msra.mxu0 0.0
        %311 = vmatprep.subr.mxu0 0.0
        %312 = vmatpush1.msra.mxu0 0.0
        %313 = vmatprep.subr.mxu0 0.0
        %314 = vmatpush1.msra.mxu0 0.0
        %315 = vmatprep.subr.mxu0 0.0
        %316 = vmatpush1.msra.mxu0 0.0
        %317 = vmatprep.subr.mxu0 0.0
        %318 = vmatpush1.msra.mxu0 0.0
        %319 = vmatprep.subr.mxu0 0.0
        %320 = vmatpush1.msra.mxu0 0.0
        %321 = vmatprep.subr.mxu0 0.0
        %322 = vmatpush1.msra.mxu0 0.0
        %323 = vmatprep.subr.mxu0 0.0
        %324 = vmatpush1.msra.mxu0 0.0
        %325 = vmatprep.subr.mxu0 0.0
        %326 = vmatpush1.msra.mxu0 0.0
        %327 = vmatprep.subr.mxu0 0.0
        %328 = vmatpush1.msra.mxu0 0.0
        %329 = vmatprep.subr.mxu0 0.0
        %330 = vmatpush1.msra.mxu0 0.0
        %331 = vmatprep.subr.mxu0 0.0
        %332 = vmatpush1.msra.mxu0 0.0
        %333 = vmatprep.subr.mxu0 0.0
        %334 = vmatpush1.msra.mxu0 0.0
        %335 = vmatprep.subr.mxu0 0.0
        %336 = vmatpush1.msra.mxu0 0.0
        %337 = vmatprep.subr.mxu0 0.0
        %338 = vmatpush1.msra.mxu0 0.0
        %339 = vmatprep.subr.mxu0 0.0
        %340 = vmatpush1.msra.mxu0 0.0
        %341 = vmatprep.subr.mxu0 0.0
        %342 = vmatpush1.msra.mxu0 0.0
        %343 = vmatprep.subr.mxu0 0.0
        %344 = vmatpush1.msra.mxu0 0.0
        %345 = vmatprep.subr.mxu0 0.0
        %346 = vmatpush1.msra.mxu0 0.0
        %347 = vmatprep.subr.mxu0 0.0
        %348 = vmatpush1.msra.mxu0 0.0
        %349 = vmatprep.mubr.f32.mxu0 0.0
        %350 = vmatmul.mubr.f32.gmra.mrb[0].mxu0 %v279
        %v351 = vpop.f32.mrb[0].mxu0
        %v352 = vadd.f32 0.0, %v351
        %v353 = vpop.f32.mrb[0].mxu0
        %354 = vdwg.mxu0
        %vm355 = vcmp.ge.f32.partialorder %v352, 0.0
        %v356 = vmul.f32 %v352, 0.01
        %v357 = vsel %vm355, %v352, %v356
        %358 = vrot.lane.b32.xlu0 %v357, 1
        %v359 = vpop.permute.xlu0 %358
        %v360 = vsel %vm263, 0.0, %v359
        %361 = vrot.lane.b32.xlu0 %v357, 127
        %v362 = vpop.permute.xlu0 %361
        %v363 = vsel %vm268, 0.0, %v362
        %v364 = vld [vmem:[#allocation7] sm:$0xff]
        %v365 = vld [vmem:[#allocation7 + $0x8] sm:$0xff]
        %vm366 = vcmask 203776
        %v368 = vsel %vm366, %v364, 0
        %v371 = vsel %vm366, %v365, 0
        %vm373 = vcmask 1040384
        %v375 = vsel %vm373, 1.0, 0
        %377 = vmatprep.subr.mxu0 0.0
        %378 = vmatpush1.msra.mxu0 %v360
        %379 = vmatprep.subr.mxu0 0.0
        %380 = vmatpush1.msra.mxu0 %v357
        %381 = vmatprep.subr.mxu0 0.0
        %382 = vmatpush1.msra.mxu0 %v363
        %383 = vmatprep.subr.mxu0 0.0
        %384 = vmatpush1.msra.mxu0 %v375
        %385 = vmatprep.subr.mxu0 0.0
        %386 = vmatpush1.msra.mxu0 0.0
        %387 = vmatprep.subr.mxu0 0.0
        %388 = vmatpush1.msra.mxu0 0.0
        %389 = vmatprep.subr.mxu0 0.0
        %390 = vmatpush1.msra.mxu0 0.0
        %391 = vmatprep.subr.mxu0 0.0
        %392 = vmatpush1.msra.mxu0 0.0
        %393 = vmatprep.subr.mxu0 0.0
        %394 = vmatpush1.msra.mxu0 0.0
        %395 = vmatprep.subr.mxu0 0.0
        %396 = vmatpush1.msra.mxu0 0.0
        %397 = vmatprep.subr.mxu0 0.0
        %398 = vmatpush1.msra.mxu0 0.0
        %399 = vmatprep.subr.mxu0 0.0
        %400 = vmatpush1.msra.mxu0 0.0
        %401 = vmatprep.subr.mxu0 0.0
        %402 = vmatpush1.msra.mxu0 0.0
        %403 = vmatprep.subr.mxu0 0.0
        %404 = vmatpush1.msra.mxu0 0.0
        %405 = vmatprep.subr.mxu0 0.0
        %406 = vmatpush1.msra.mxu0 0.0
        %407 = vmatprep.subr.mxu0 0.0
        %408 = vmatpush1.msra.mxu0 0.0
        %409 = vmatprep.subr.mxu0 0.0
        %410 = vmatpush1.msra.mxu0 0.0
        %411 = vmatprep.subr.mxu0 0.0
        %412 = vmatpush1.msra.mxu0 0.0
        %413 = vmatprep.subr.mxu0 0.0
        %414 = vmatpush1.msra.mxu0 0.0
        %415 = vmatprep.subr.mxu0 0.0
        %416 = vmatpush1.msra.mxu0 0.0
        %417 = vmatprep.subr.mxu0 0.0
        %418 = vmatpush1.msra.mxu0 0.0
        %419 = vmatprep.subr.mxu0 0.0
        %420 = vmatpush1.msra.mxu0 0.0
        %421 = vmatprep.subr.mxu0 0.0
        %422 = vmatpush1.msra.mxu0 0.0
        %423 = vmatprep.subr.mxu0 0.0
        %424 = vmatpush1.msra.mxu0 0.0
        %425 = vmatprep.subr.mxu0 0.0
        %426 = vmatpush1.msra.mxu0 0.0
        %427 = vmatprep.subr.mxu0 0.0
        %428 = vmatpush1.msra.mxu0 0.0
        %429 = vmatprep.subr.mxu0 0.0
        %430 = vmatpush1.msra.mxu0 0.0
        %431 = vmatprep.subr.mxu0 0.0
        %432 = vmatpush1.msra.mxu0 0.0
        %433 = vmatprep.subr.mxu0 0.0
        %434 = vmatpush1.msra.mxu0 0.0
        %435 = vmatprep.subr.mxu0 0.0
        %436 = vmatpush1.msra.mxu0 0.0
        %437 = vmatprep.subr.mxu0 0.0
        %438 = vmatpush1.msra.mxu0 0.0
        %439 = vmatprep.subr.mxu0 0.0
        %440 = vmatpush1.msra.mxu0 0.0
        %441 = vmatprep.mubr.f32.mxu0 0.0
        %442 = vmatmul.mubr.f32.gmra.mrb[0].mxu0 %v368
        %v443 = vpop.f32.mrb[0].mxu0
        %v444 = vadd.f32 0.0, %v443
        %v445 = vpop.f32.mrb[0].mxu0
        %446 = vmatprep.mubr.f32.mxu0 0.0
        %447 = vmatmul.mubr.f32.gmra.mrb[0].mxu0 %v371
        %v448 = vpop.f32.mrb[0].mxu0
        %v449 = vadd.f32 0.0, %v448
        %v450 = vpop.f32.mrb[0].mxu0
        %451 = vdwg.mxu0
        %vm452 = vcmp.ge.f32.partialorder %v444, 0.0
        %vm453 = vcmp.ge.f32.partialorder %v449, 0.0
        %v454 = vmul.f32 %v444, 0.01
        %v455 = vmul.f32 %v449, 0.01
        %v456 = vsel %vm452, %v444, %v454
        %v457 = vsel %vm453, %v449, %v455
        %458 = vrot.lane.b32.xlu0 %v456, 1
        %v459 = vpop.permute.xlu0 %458
        %460 = vrot.lane.b32.xlu0 %v457, 1
        %v461 = vpop.permute.xlu0 %460
        %v462 = vsel %vm263, 0.0, %v459
        %v463 = vsel %vm263, 0.0, %v461
        %464 = vrot.lane.b32.xlu0 %v456, 127
        %v465 = vpop.permute.xlu0 %464
        %466 = vrot.lane.b32.xlu0 %v457, 127
        %v467 = vpop.permute.xlu0 %466
        %v468 = vsel %vm268, 0.0, %v465
        %v469 = vsel %vm268, 0.0, %v467
        %v470 = vld [vmem:[#allocation8] sm:$0xff]
        %v471 = vld [vmem:[#allocation8 + $0x8] sm:$0xff]
        %vm472 = vcmask 400384
        %v474 = vsel %vm472, %v470, 0
        %v477 = vsel %vm472, %v471, 0
        %479 = vmatprep.subr.mxu0 0.0
        %480 = vmatpush1.msra.mxu0 %v462
        %481 = vmatprep.subr.mxu0 0.0
        %482 = vmatpush1.msra.mxu0 %v463
        %483 = vmatprep.subr.mxu0 0.0
        %484 = vmatpush1.msra.mxu0 %v456
        %485 = vmatprep.subr.mxu0 0.0
        %486 = vmatpush1.msra.mxu0 %v457
        %487 = vmatprep.subr.mxu0 0.0
        %488 = vmatpush1.msra.mxu0 %v468
        %489 = vmatprep.subr.mxu0 0.0
        %490 = vmatpush1.msra.mxu0 %v469
        %491 = vmatprep.subr.mxu0 0.0
        %492 = vmatpush1.msra.mxu0 %v375
        %493 = vmatprep.subr.mxu0 0.0
        %494 = vmatpush1.msra.mxu0 0.0
        %495 = vmatprep.subr.mxu0 0.0
        %496 = vmatpush1.msra.mxu0 0.0
        %497 = vmatprep.subr.mxu0 0.0
        %498 = vmatpush1.msra.mxu0 0.0
        %499 = vmatprep.subr.mxu0 0.0
        %500 = vmatpush1.msra.mxu0 0.0
        %501 = vmatprep.subr.mxu0 0.0
        %502 = vmatpush1.msra.mxu0 0.0
        %503 = vmatprep.subr.mxu0 0.0
        %504 = vmatpush1.msra.mxu0 0.0
        %505 = vmatprep.subr.mxu0 0.0
        %506 = vmatpush1.msra.mxu0 0.0
        %507 = vmatprep.subr.mxu0 0.0
        %508 = vmatpush1.msra.mxu0 0.0
        %509 = vmatprep.subr.mxu0 0.0
        %510 = vmatpush1.msra.mxu0 0.0
        %511 = vmatprep.subr.mxu0 0.0
        %512 = vmatpush1.msra.mxu0 0.0
        %513 = vmatprep.subr.mxu0 0.0
        %514 = vmatpush1.msra.mxu0 0.0
        %515 = vmatprep.subr.mxu0 0.0
        %516 = vmatpush1.msra.mxu0 0.0
        %517 = vmatprep.subr.mxu0 0.0
        %518 = vmatpush1.msra.mxu0 0.0
        %519 = vmatprep.subr.mxu0 0.0
        %520 = vmatpush1.msra.mxu0 0.0
        %521 = vmatprep.subr.mxu0 0.0
        %522 = vmatpush1.msra.mxu0 0.0
        %523 = vmatprep.subr.mxu0 0.0
        %524 = vmatpush1.msra.mxu0 0.0
        %525 = vmatprep.subr.mxu0 0.0
        %526 = vmatpush1.msra.mxu0 0.0
        %527 = vmatprep.subr.mxu0 0.0
        %528 = vmatpush1.msra.mxu0 0.0
        %529 = vmatprep.subr.mxu0 0.0
        %530 = vmatpush1.msra.mxu0 0.0
        %531 = vmatprep.subr.mxu0 0.0
        %532 = vmatpush1.msra.mxu0 0.0
        %533 = vmatprep.subr.mxu0 0.0
        %534 = vmatpush1.msra.mxu0 0.0
        %535 = vmatprep.subr.mxu0 0.0
        %536 = vmatpush1.msra.mxu0 0.0
        %537 = vmatprep.subr.mxu0 0.0
        %538 = vmatpush1.msra.mxu0 0.0
        %539 = vmatprep.subr.mxu0 0.0
        %540 = vmatpush1.msra.mxu0 0.0
        %541 = vmatprep.subr.mxu0 0.0
        %542 = vmatpush1.msra.mxu0 0.0
        %543 = vmatprep.mubr.f32.mxu0 0.0
        %544 = vmatmul.mubr.f32.gmra.mrb[0].mxu0 %v474
        %v545 = vpop.f32.mrb[0].mxu0
        %v546 = vadd.f32 0.0, %v545
        %v547 = vpop.f32.mrb[0].mxu0
        %548 = vmatprep.mubr.f32.mxu0 0.0
        %549 = vmatmul.mubr.f32.gmra.mrb[0].mxu0 %v477
        %v550 = vpop.f32.mrb[0].mxu0
        %v551 = vadd.f32 0.0, %v550
        %v552 = vpop.f32.mrb[0].mxu0
        %553 = vdwg.mxu0
        %554 = vst [vmem:[%s254] sm:$0xff] %v546
        %555 = vst [vmem:[%s254 + $0x8] sm:$0xff] %v551
        %s556 = sand.u32 %s120, 1
        %s557 = scalar_lea.sflag [#allocation4], %s556
        %s558 = sand.u32 %s120, 1
        %s559 = smul.addr %s558, 16
        %s560 = scalar_lea.vmem [#allocation10], %s559
        // Predicated region
        $region53: #{mixer_forward.1} parent=35 // pred_check
          %p561 = pneg %p130
        $region54: #{mixer_forward.1} parent=35 // pred_check_branch
          %563 = sbr.rel (%p561) target = $region56
        $region55: #{mixer_forward.1} parent=35 // pred_region
          %s565 = ssub.s32 256, 256
          %566 = vsyncadd %s557, %s565
          %s567 = smul.addr %s23, 2
          %s568 = smul.addr %s567, 128
          %s569 = scalar_lea.hbm %s4, %s568
          %s570 = sshll.u32 %s560, 4
          %s571 = int_to_ptr.vmem [resolvable:$true] %s570
          %576 = dma.vmem_to_hbm [thread:$0]  %s571, 256, %s569, %s557, 128, 128, 8
        $region56: #{mixer_forward.1} parent=35 // pred_fallthru
          _
      $region36: #{mixer_forward.1} parent=5 // pred_fallthru
        _
      %p577 = scmp.le.s32.totalorder 2, %s18
      // Predicated region
      $region57: #{mixer_forward.1} parent=5 // pred_check
        %p578 = pneg %p577
      $region58: #{mixer_forward.1} parent=5 // pred_check_branch
        %580 = sbr.rel (%p578) target = $region60
      $region59: #{mixer_forward.1} parent=5 // pred_region
        %s581 = ssub.s32 %s18, 2
        // Predicated region
        $region61: #{mixer_forward.1} parent=59 // pred_check
          %p582 = pneg %p136
        $region62: #{mixer_forward.1} parent=59 // pred_check_branch
          %584 = sbr.rel (%p582) target = $region64
        $region63: #{mixer_forward.1} parent=59 // pred_region
          %s585 = sand.u32 %s121, 1
          %s586 = scalar_lea.sflag [#allocation4], %s585
          %s587 = sand.u32 %s121, 1
          %s588 = smul.addr %s587, 16
          %s589 = scalar_lea.vmem [#allocation10], %s588
          %590 = dma.done %s586, 256
        $region64: #{mixer_forward.1} parent=59 // pred_fallthru
          _
      $region60: #{mixer_forward.1} parent=5 // pred_fallthru
        _
    $region6: #{mixer_forward.1} parent=1 // loop_footer
      %s22 = sadd.s32 1, %s18
    $region7: #{mixer_forward.1} parent=1 // loop_footer_branch
      %17 = sbr.rel target = $region3
    $region8: #{mixer_forward.1} parent=1 // loop_exit
      _
    %591 = vsyncpa [#allocation3], 1
    %s592 = scalar_lea.sflag [#allocation3], 1
    %593 = vsyncpa %s592, 1
    %594 = vsyncpa [#allocation6], 1
    %595 = vsyncpa [#allocation9], 1
    %596 = vsyncpa [#allocation4], 1
    %s597 = scalar_lea.sflag [#allocation4], 1
    %598 = vsyncpa %s597, 1

</llo_original>
